<compile_context>
chip_gen: v7x
topology: tpu7x:2x2x1
jax: 0.10.0
libtpu: 0.0.40
codegen_flags: <defaults>
</compile_context>

<pallas_src>
import functools

import jax
import jax.numpy as jnp
from jax.experimental import pallas as pl
from jax.experimental.pallas import tpu as pltpu


def _round_up(x, m):
    return ((x + m - 1) // m) * m


# ---------------------------------------------------------------------------
# Kernel
# ---------------------------------------------------------------------------
def _critic_mlp_kernel(s_ref, a_ref, w1s_ref, w1a_ref, b1_ref,
                       w2_ref, b2_ref, w3_ref, b3_ref, o_ref,
                       *, lane_dense_out):
    """Fused cat([state, action]) -> fc1 -> relu -> fc2 -> relu -> fc3."""
    cd = w1s_ref.dtype                       # compute dtype = weight dtype

    # fc1 over the fused concat: [s, a] @ W1 == s @ W1_s + a @ W1_a.
    # In-kernel cast (VPU, free) replaces the old wrapper-side bf16 cast pass.
    h1 = jnp.dot(s_ref[...].astype(cd), w1s_ref[...],
                 preferred_element_type=jnp.float32)
    h1 = h1 + jnp.dot(a_ref[...].astype(cd), w1a_ref[...],
                      preferred_element_type=jnp.float32)
    h1 = jnp.maximum(h1 + b1_ref[...], 0.0)          # f32 bias + ReLU

    # fc2 + relu.
    h2 = jnp.dot(h1.astype(cd), w2_ref[...], preferred_element_type=jnp.float32)
    h2 = jnp.maximum(h2 + b2_ref[...], 0.0)

    # fc3 (no activation).
    if lane_dense_out:
        # w3_ref holds W3^T (out, h2); contract the h2 axes so the MXU emits
        # the (out, tb) result directly -> batch on the 128-lane axis, dense
        # unmasked vst writeback (no XLU transpose needed).
        out = jax.lax.dot_general(
            w3_ref[...], h2.astype(cd),
            dimension_numbers=(((1,), (1,)), ((), ())),
            preferred_element_type=jnp.float32)
        o_ref[...] = (out + b3_ref[...]).astype(o_ref.dtype)   # b3: (out, 1)
    else:
        out = jnp.dot(h2.astype(cd), w3_ref[...],
                      preferred_element_type=jnp.float32)
        o_ref[...] = (out + b3_ref[...]).astype(o_ref.dtype)   # b3: (1, out)


# ---------------------------------------------------------------------------
# Batch-tile selection (runs at trace time; all shapes are static)
# ---------------------------------------------------------------------------
def _pick_batch_tile(B, block_b):
    """Choose (tb, b_pad) for the 1-D batch grid.

    Preferences, in order: tb divides B (no pad pass over the inputs),
    tb % 8 == 0 (f32 sublane tiling), >= 2 grid steps (v7x megacore split),
    tb % 128 == 0 (enables the lane-dense output layout), tb as large as
    possible (<= block_b) to amortize the ~0.35 us per-step overhead.
    """
    cap = max(8, min(block_b, _round_up(B, 8)))
    divisors = [d for d in range(8, cap + 1, 8) if B % d == 0]
    if divisors:
        two_step = [d for d in divisors if B // d >= 2]
        pool = two_step if two_step else divisors
        lane = [d for d in pool if d % 128 == 0]
        tb = max(lane) if lane else max(pool)
        return tb, B
    # Rare fallback (B not a multiple of 8): pad the batch.  This costs one
    # extra HBM pass over the inputs; prefer batches that are multiples of 8.
    if B > 8:
        tb = max(8, min(block_b, _round_up(-(-B // 2), 8)))
    else:
        tb = _round_up(B, 8)
    return tb, _round_up(B, tb)


# ---------------------------------------------------------------------------
# Forward pass
# ---------------------------------------------------------------------------
@functools.partial(jax.jit, static_argnames=("block_b",))
def critic_forward(state, action, params, *, block_b=2048):
    """CriticNetwork forward: fc3(relu(fc2(relu(fc1(cat(s, a)))))).

    state:  (B, state_dim) float32
    action: (B, action_dim) float32
    params: output of prepare_params() (pre-split / pre-cast, call once).
    Returns (B, out_size) float32.
    """
    B, state_dim = state.shape
    action_dim = action.shape[1]
    h1_size = params["w1_s"].shape[1]
    h2_size = params["w2"].shape[1]
    out_size = params["w3"].shape[1]

    tb, b_pad = _pick_batch_tile(B, block_b)
    grid = (b_pad // tb,)

    # Lane-dense (batch-on-lanes) output layout whenever the block shape
    # satisfies the (8, 128) constraint for it.
    lane_dense = (tb % 128 == 0) or (tb == b_pad)

    if b_pad != B:   # rare fallback; see _pick_batch_tile
        pad = b_pad - B
        state = jnp.pad(state, ((0, pad), (0, 0)))
        action = jnp.pad(action, ((0, pad), (0, 0)))

    # Batch-tiled activation streams (kept f32; cast happens in-kernel).
    state_spec = pl.BlockSpec((tb, state_dim), lambda i: (i, 0))
    action_spec = pl.BlockSpec((tb, action_dim), lambda i: (i, 0))

    # Grid-invariant weights/biases: full-array blocks pinned to block (0, 0)
    # so they stay VMEM-resident across grid steps.
    def resident(arr):
        return pl.BlockSpec(arr.shape, lambda i: (0, 0))

    if lane_dense:
        w3, b3 = params["w3_t"], params["b3_t"]
        out_shape = jax.ShapeDtypeStruct((out_size, b_pad), jnp.float32)
        out_spec = pl.BlockSpec((out_size, tb), lambda i: (0, i))
    else:
        w3, b3 = params["w3"], params["b3"]
        out_shape = jax.ShapeDtypeStruct((b_pad, out_size), jnp.float32)
        out_spec = pl.BlockSpec((tb, out_size), lambda i: (i, 0))

    operands = (state, action, params["w1_s"], params["w1_a"], params["b1"],
                params["w2"], params["b2"], w3, b3)
    in_specs = [state_spec, action_spec] + [resident(x) for x in operands[2:]]

    # Advisory cost estimate so XLA can schedule/overlap surrounding ops.
    flops = 2 * B * ((state_dim + action_dim) * h1_size
                     + h1_size * h2_size + h2_size * out_size)
    bytes_accessed = int(sum(x.size * jnp.dtype(x.dtype).itemsize
                             for x in operands) + b_pad * out_size * 4)

    out = pl.pallas_call(
        functools.partial(_critic_mlp_kernel, lane_dense_out=lane_dense),
        out_shape=out_shape,
        grid=grid,
        in_specs=in_specs,
        out_specs=out_spec,
        compiler_params=pltpu.CompilerParams(
            dimension_semantics=("parallel",),          # megacore batch split
            vmem_limit_bytes=32 * 1024 * 1024),         # v5e default is 16 MiB
        cost_estimate=pl.CostEstimate(
            flops=flops, transcendentals=0, bytes_accessed=bytes_accessed),
    )(*operands)

    if lane_dense:
        return out[:, :B].T        # tiny (out_size, B) -> (B, out_size)
    return out[:B]


# ---------------------------------------------------------------------------
# Parameter handling
# ---------------------------------------------------------------------------
def prepare_params(raw_params, state_dim, compute_dtype=jnp.bfloat16):
    """One-time parameter prep, hoisted out of the per-call hot path:
    split W1 across the state|action concat boundary, cast weights to the
    compute dtype (biases stay f32 for the f32 epilogue), and keep both
    orientations of fc3 for the lane-dense output layout.
    Weights are expected in (in_features, out_features) layout."""
    cd = compute_dtype
    w1 = jnp.asarray(raw_params["w1"])
    w3 = jnp.asarray(raw_params["w3"])
    b1 = jnp.asarray(raw_params["b1"], jnp.float32).reshape(1, -1)
    b2 = jnp.asarray(raw_params["b2"], jnp.float32).reshape(1, -1)
    b3 = jnp.asarray(raw_params["b3"], jnp.float32).reshape(1, -1)
    return {
        "w1_s": w1[:state_dim, :].astype(cd),
        "w1_a": w1[state_dim:, :].astype(cd),
        "b1": b1,
        "w2": jnp.asarray(raw_params["w2"]).astype(cd),
        "b2": b2,
        "w3": w3.astype(cd),
        "b3": b3,
        "w3_t": w3.T.astype(cd),          # (out, h2) for lane-dense fc3
        "b3_t": b3.reshape(-1, 1),        # (out, 1)
    }


def init_params(key, in_size, h1_size, h2_size, out_size):
    """nn.Linear-style U(-1/sqrt(fan_in), +1/sqrt(fan_in)) init.
    Weights stored transposed: (in_features, out_features)."""
    ks = jax.random.split(key, 6)

    def lin(kw, kb, fan_in, fan_out):
        bound = 1.0 / jnp.sqrt(jnp.float32(fan_in))
        w = jax.random.uniform(kw, (fan_in, fan_out), jnp.float32, -bound, bound)
        b = jax.random.uniform(kb, (1, fan_out), jnp.float32, -bound, bound)
        return w, b

    w1, b1 = lin(ks[0], ks[1], in_size, h1_size)
    w2, b2 = lin(ks[2], ks[3], h1_size, h2_size)
    w3, b3 = lin(ks[4], ks[5], h2_size, out_size)
    return {"w1": w1, "b1": b1, "w2": w2, "b2": b2, "w3": w3, "b3": b3}


if __name__ == "__main__":
    # Small MADDPG-style critic sizes.
    state_dim, action_dim = 24, 8
    in_size = state_dim + action_dim          # 32
    h1_size, h2_size, out_size = 64, 32, 1

    key = jax.random.PRNGKey(0)
    raw = init_params(jax.random.fold_in(key, 123), in_size, h1_size, h2_size,
                      out_size)
    params_f32 = prepare_params(raw, state_dim, compute_dtype=jnp.float32)
    params_bf16 = prepare_params(raw, state_dim, compute_dtype=jnp.bfloat16)

    def reference(state, action):
        x = jnp.concatenate([state, action], axis=1)
        h = jnp.maximum(x @ raw["w1"] + raw["b1"], 0.0)
        h = jnp.maximum(h @ raw["w2"] + raw["b2"], 0.0)
        return h @ raw["w3"] + raw["b3"]

    ok = True
    # B=64 exercises the (tb, out) layout (tb=32, grid=(2,));
    # B=256 exercises the lane-dense transposed layout (tb=128, grid=(2,)).
    for batch in (64, 256):
        k_s, k_a = jax.random.split(jax.random.fold_in(key, batch))
        state = jax.random.normal(k_s, (batch, state_dim), jnp.float32)
        action = jax.random.normal(k_a, (batch, action_dim), jnp.float32)
        ref = reference(state, action)

        out_f32 = jax.block_until_ready(critic_forward(state, action, params_f32))
        ok &= out_f32.shape == (batch, out_size)
        ok &= bool(jnp.allclose(out_f32, ref, atol=1e-4, rtol=1e-4))

        out_bf16 = jax.block_until_ready(critic_forward(state, action, params_bf16))
        ok &= out_bf16.shape == (batch, out_size)
        ok &= bool(jnp.allclose(out_bf16, ref, atol=5e-2, rtol=5e-2))

    if ok:
        print("KERNEL_OK")
    else:
        raise SystemExit("FAILED: kernel output does not match reference")
</pallas_src>

<mosaic_0001>
module attributes {stable_mosaic.version = 11 : i64} {
  func.func @_critic_mlp_kernel(%arg0: i32, %arg1: memref<32x24xf32, #tpu.memory_space<vmem>>, %arg2: memref<32x8xf32, #tpu.memory_space<vmem>>, %arg3: memref<24x64xf32, #tpu.memory_space<vmem>>, %arg4: memref<8x64xf32, #tpu.memory_space<vmem>>, %arg5: memref<1x64xf32, #tpu.memory_space<vmem>>, %arg6: memref<64x32xf32, #tpu.memory_space<vmem>>, %arg7: memref<1x32xf32, #tpu.memory_space<vmem>>, %arg8: memref<32x1xf32, #tpu.memory_space<vmem>>, %arg9: memref<1x1xf32, #tpu.memory_space<vmem>>, %arg10: memref<32x1xf32, #tpu.memory_space<vmem>>) attributes {dimension_semantics = [#tpu.dimension_semantics<parallel>], iteration_bounds = array<i64: 2>, scalar_prefetch = 0 : i64, scratch_operands = 0 : i64, tpu.core_type = #tpu.core_type<tc>, window_params = [{transform_indices = @transform_0, window_bounds = array<i64: 32, 24>}, {transform_indices = @transform_1, window_bounds = array<i64: 32, 8>}, {pipeline_mode = #tpu.pipeline_mode<synchronous>, transform_indices = @transform_2, window_bounds = array<i64: 24, 64>}, {pipeline_mode = #tpu.pipeline_mode<synchronous>, transform_indices = @transform_3, window_bounds = array<i64: 8, 64>}, {pipeline_mode = #tpu.pipeline_mode<synchronous>, transform_indices = @transform_4, window_bounds = array<i64: 1, 64>}, {pipeline_mode = #tpu.pipeline_mode<synchronous>, transform_indices = @transform_5, window_bounds = array<i64: 64, 32>}, {pipeline_mode = #tpu.pipeline_mode<synchronous>, transform_indices = @transform_6, window_bounds = array<i64: 1, 32>}, {pipeline_mode = #tpu.pipeline_mode<synchronous>, transform_indices = @transform_7, window_bounds = array<i64: 32, 1>}, {pipeline_mode = #tpu.pipeline_mode<synchronous>, transform_indices = @transform_8, window_bounds = array<i64: 1, 1>}, {transform_indices = @transform_9, window_bounds = array<i64: 32, 1>}]} {
    %c0 = arith.constant 0 : index
    %c0_0 = arith.constant 0 : index
    %0 = vector.load %arg1[%c0, %c0_0] : memref<32x24xf32, #tpu.memory_space<vmem>>, vector<32x24xf32>
    %c0_1 = arith.constant 0 : index
    %c0_2 = arith.constant 0 : index
    %1 = vector.load %arg3[%c0_1, %c0_2] : memref<24x64xf32, #tpu.memory_space<vmem>>, vector<24x64xf32>
    %cst = arith.constant dense<0.000000e+00> : vector<32x64xf32>
    %2 = tpu.matmul %0, %1, %cst {dimension_numbers = #tpu.dot_dimension_numbers<[1], [0], [0], [1], [0, 0, 1, 1], [], []>} : vector<32x24xf32>, vector<24x64xf32>, vector<32x64xf32> -> vector<32x64xf32>
    %c0_3 = arith.constant 0 : index
    %c0_4 = arith.constant 0 : index
    %3 = vector.load %arg2[%c0_3, %c0_4] : memref<32x8xf32, #tpu.memory_space<vmem>>, vector<32x8xf32>
    %c0_5 = arith.constant 0 : index
    %c0_6 = arith.constant 0 : index
    %4 = vector.load %arg4[%c0_5, %c0_6] : memref<8x64xf32, #tpu.memory_space<vmem>>, vector<8x64xf32>
    %cst_7 = arith.constant dense<0.000000e+00> : vector<32x64xf32>
    %5 = tpu.matmul %3, %4, %cst_7 {dimension_numbers = #tpu.dot_dimension_numbers<[1], [0], [0], [1], [0, 0, 1, 1], [], []>} : vector<32x8xf32>, vector<8x64xf32>, vector<32x64xf32> -> vector<32x64xf32>
    %6 = arith.addf %2, %5 : vector<32x64xf32>
    %c0_8 = arith.constant 0 : index
    %c0_9 = arith.constant 0 : index
    %7 = vector.load %arg5[%c0_8, %c0_9] : memref<1x64xf32, #tpu.memory_space<vmem>>, vector<1x64xf32>
    %8 = vector.broadcast %7 : vector<1x64xf32> to vector<32x64xf32>
    %9 = arith.addf %6, %8 : vector<32x64xf32>
    %cst_10 = arith.constant 0.000000e+00 : f32
    %10 = vector.broadcast %cst_10 : f32 to vector<32x64xf32>
    %11 = arith.maximumf %9, %10 : vector<32x64xf32>
    %c0_11 = arith.constant 0 : index
    %c0_12 = arith.constant 0 : index
    %12 = vector.load %arg6[%c0_11, %c0_12] : memref<64x32xf32, #tpu.memory_space<vmem>>, vector<64x32xf32>
    %cst_13 = arith.constant dense<0.000000e+00> : vector<32x32xf32>
    %13 = tpu.matmul %11, %12, %cst_13 {dimension_numbers = #tpu.dot_dimension_numbers<[1], [0], [0], [1], [0, 0, 1, 1], [], []>} : vector<32x64xf32>, vector<64x32xf32>, vector<32x32xf32> -> vector<32x32xf32>
    %c0_14 = arith.constant 0 : index
    %c0_15 = arith.constant 0 : index
    %14 = vector.load %arg7[%c0_14, %c0_15] : memref<1x32xf32, #tpu.memory_space<vmem>>, vector<1x32xf32>
    %15 = vector.broadcast %14 : vector<1x32xf32> to vector<32x32xf32>
    %16 = arith.addf %13, %15 : vector<32x32xf32>
    %cst_16 = arith.constant 0.000000e+00 : f32
    %17 = vector.broadcast %cst_16 : f32 to vector<32x32xf32>
    %18 = arith.maximumf %16, %17 : vector<32x32xf32>
    %c0_17 = arith.constant 0 : index
    %c0_18 = arith.constant 0 : index
    %19 = vector.load %arg8[%c0_17, %c0_18] : memref<32x1xf32, #tpu.memory_space<vmem>>, vector<32x1xf32>
    %cst_19 = arith.constant dense<0.000000e+00> : vector<32x1xf32>
    %20 = tpu.matmul %18, %19, %cst_19 {dimension_numbers = #tpu.dot_dimension_numbers<[1], [0], [0], [1], [0, 0, 1, 1], [], []>} : vector<32x32xf32>, vector<32x1xf32>, vector<32x1xf32> -> vector<32x1xf32>
    %c0_20 = arith.constant 0 : index
    %c0_21 = arith.constant 0 : index
    %21 = vector.load %arg9[%c0_20, %c0_21] : memref<1x1xf32, #tpu.memory_space<vmem>>, vector<1x1xf32>
    %22 = vector.broadcast %21 : vector<1x1xf32> to vector<32x1xf32>
    %23 = arith.addf %20, %22 : vector<32x1xf32>
    %c0_22 = arith.constant 0 : index
    %c0_23 = arith.constant 0 : index
    %24 = vector.load %arg10[%c0_22, %c0_23] : memref<32x1xf32, #tpu.memory_space<vmem>>, vector<32x1xf32>
    tpu.vector_store %arg10[%c0_22, %c0_23], %23 {strides = array<i32>} : memref<32x1xf32, #tpu.memory_space<vmem>>, vector<32x1xf32>,
    return
  }
  func.func @transform_0(%arg0: i32) -> (i32, i32) {
    %c0_i32 = arith.constant 0 : i32
    %c0_i32_0 = arith.constant 0 : i32
    return %arg0, %c0_i32 : i32, i32
  }
  func.func @transform_1(%arg0: i32) -> (i32, i32) {
    %c0_i32 = arith.constant 0 : i32
    %c0_i32_0 = arith.constant 0 : i32
    return %arg0, %c0_i32 : i32, i32
  }
  func.func @transform_2(%arg0: i32) -> (i32, i32) {
    %c0_i32 = arith.constant 0 : i32
    %c0_i32_0 = arith.constant 0 : i32
    %c0_i32_1 = arith.constant 0 : i32
    return %c0_i32, %c0_i32_0 : i32, i32
  }
  func.func @transform_3(%arg0: i32) -> (i32, i32) {
    %c0_i32 = arith.constant 0 : i32
    %c0_i32_0 = arith.constant 0 : i32
    %c0_i32_1 = arith.constant 0 : i32
    return %c0_i32, %c0_i32_0 : i32, i32
  }
  func.func @transform_4(%arg0: i32) -> (i32, i32) {
    %c0_i32 = arith.constant 0 : i32
    %c0_i32_0 = arith.constant 0 : i32
    %c0_i32_1 = arith.constant 0 : i32
    return %c0_i32, %c0_i32_0 : i32, i32
  }
  func.func @transform_5(%arg0: i32) -> (i32, i32) {
    %c0_i32 = arith.constant 0 : i32
    %c0_i32_0 = arith.constant 0 : i32
    %c0_i32_1 = arith.constant 0 : i32
    return %c0_i32, %c0_i32_0 : i32, i32
  }
  func.func @transform_6(%arg0: i32) -> (i32, i32) {
    %c0_i32 = arith.constant 0 : i32
    %c0_i32_0 = arith.constant 0 : i32
    %c0_i32_1 = arith.constant 0 : i32
    return %c0_i32, %c0_i32_0 : i32, i32
  }
  func.func @transform_7(%arg0: i32) -> (i32, i32) {
    %c0_i32 = arith.constant 0 : i32
    %c0_i32_0 = arith.constant 0 : i32
    %c0_i32_1 = arith.constant 0 : i32
    return %c0_i32, %c0_i32_0 : i32, i32
  }
  func.func @transform_8(%arg0: i32) -> (i32, i32) {
    %c0_i32 = arith.constant 0 : i32
    %c0_i32_0 = arith.constant 0 : i32
    %c0_i32_1 = arith.constant 0 : i32
    return %c0_i32, %c0_i32_0 : i32, i32
  }
  func.func @transform_9(%arg0: i32) -> (i32, i32) {
    %c0_i32 = arith.constant 0 : i32
    %c0_i32_0 = arith.constant 0 : i32
    return %arg0, %c0_i32 : i32, i32
  }
}

</mosaic_0001>

<llo_original>
// kernel: critic_forward.1
$region0: #{critic_forward.1}
  #allocation0 [shape = 'u32[]', space=smem, size = 0x4, offset = 0x4, fixed_abs, tag = 'smem constant byte address 0x4 - core index']
  #allocation1 [shape = 'u32[144,128]{1,0:T(1,128)}', space=vmem, size = 0x12000, scoped, tag = 'internal scratch']
  #allocation2 [shape = 'f32[1,1]{1,0:T(1,128)S(1)}', space=vmem, size = 0x200, scoped, tag = 'scoped memory for critic_forward.1']
  %s0 = inlined_call_operand.vmem [shape: f32[64,24], index: 0, kind: input, shape index: {}]
  %s1 = inlined_call_operand.vmem [shape: f32[64,8], index: 1, kind: input, shape index: {}]
  %s2 = inlined_call_operand.vmem [shape: f32[24,64], index: 2, kind: input, shape index: {}]
  %s3 = inlined_call_operand.vmem [shape: f32[8,64], index: 3, kind: input, shape index: {}]
  %s4 = inlined_call_operand.vmem [shape: f32[1,64], index: 4, kind: input, shape index: {}]
  %s5 = inlined_call_operand.vmem [shape: f32[64,32], index: 5, kind: input, shape index: {}]
  %s6 = inlined_call_operand.vmem [shape: f32[1,32], index: 6, kind: input, shape index: {}]
  %s7 = inlined_call_operand.vmem [shape: f32[32,1], index: 7, kind: input, shape index: {}]
  %s8 = inlined_call_operand.<no memory space> [shape: f32[1,1], index: 8, kind: input, shape index: {}]
  %s9 = inlined_call_operand.vmem [shape: f32[64,1], index: 9, kind: output, shape index: {}]
  %s10 = sld [smem:[#allocation0]]
  $region69: #{critic_forward.1} parent=0
    _
  %s12 = ssub.s32 1, %s10
  %s13 = scalar_select 0, %s12, %s10
  %v14 = vstv %s8
  %15 = vst [vmem:[#allocation2] sm:$0x1] %v14
  loop: start=0, step=1, limit=4
  $region2: #{critic_forward.1} parent=0 // loop_pre_header
    _
  $region3: #{critic_forward.1} parent=0 // loop_header
    %s17 = sphi 0, %s21
    %p18 = scmp.ge.s32.totalorder %s17, 4
    %s27 = sphi 0, %s29
    %s30 = sphi 0, %s27
    %s31 = sphi 0, %s30
    %s47 = sphi 0, %s31
    %s53 = sphi 0, %s55
    %s56 = sphi 0, %s53
    %s57 = sphi 0, %s56
    %s73 = sphi 0, %s57
    %s77 = sphi 0, %s77
    %s79 = sphi 0, %s77
    %s80 = sphi 0, %s79
    %s94 = sphi 0, %s80
    %s98 = sphi 0, %s98
    %s100 = sphi 0, %s98
    %s101 = sphi 0, %s100
    %s115 = sphi 0, %s101
    %s119 = sphi 0, %s119
    %s121 = sphi 0, %s119
    %s122 = sphi 0, %s121
    %s136 = sphi 0, %s122
    %s140 = sphi 0, %s140
    %s142 = sphi 0, %s140
    %s143 = sphi 0, %s142
    %s157 = sphi 0, %s143
    %s161 = sphi 0, %s161
    %s163 = sphi 0, %s161
    %s164 = sphi 0, %s163
    %s178 = sphi 0, %s164
    %s182 = sphi 0, %s182
    %s184 = sphi 0, %s182
    %s185 = sphi 0, %s184
    %s199 = sphi 0, %s185
    %s203 = sphi 0, %s203
    %s205 = sphi 0, %s203
    %s206 = sphi 0, %s205
    %s220 = sphi 0, %s206
    %s226 = sphi 0, %s228
    %s229 = sphi 0, %s226
    %s230 = sphi 0, %s229
    %s246 = sphi 0, %s230
  $region4: #{critic_forward.1} parent=0 // loop_header_branch
    %20 = sbr.rel (%p18) target = $region8
  $region5: #{critic_forward.1} parent=0 // loop_body
    %s22 = ssub.s32 %s17, 1
    %s23 = ssub.s32 %s17, 2
    %s24 = sadd.s32 %s17, 1
    %s25 = ssub.s32 %s17, %s24
    %p26 = scmp.eq.s32.totalorder %s25, 0
    %s28 = sadd.s32 %s27, 1
    %s29 = scalar_select %p26, %s27, %s28
    %p32 = pneg %p26
    %p33 = scmp.eq.s32.totalorder %s17, 1
    %p34 = por %p32, %p33
    %p35 = scmp.ne.s32.totalorder %s27, %s30
    %p36 = scmp.eq.s32.totalorder %s17, 0
    %p37 = por %p35, %p36
    %p38 = scmp.ne.s32.totalorder %s27, %s30
    %p39 = scmp.eq.s32.totalorder %s22, 1
    %p40 = por %p38, %p39
    %p41 = scmp.ne.s32.totalorder %s30, %s31
    %p42 = scmp.eq.s32.totalorder %s22, 0
    %p43 = por %p41, %p42
    %p44 = scmp.ne.s32.totalorder %s30, %s31
    %p45 = scmp.eq.s32.totalorder %s23, 1
    %p46 = por %p44, %p45
    %p48 = scmp.ne.s32.totalorder %s31, %s47
    %p49 = scmp.eq.s32.totalorder %s23, 0
    %p50 = por %p48, %p49
    %s51 = ssub.s32 %s17, %s24
    %p52 = scmp.eq.s32.totalorder %s51, 0
    %s54 = sadd.s32 %s53, 1
    %s55 = scalar_select %p52, %s53, %s54
    %p58 = pneg %p52
    %p59 = scmp.eq.s32.totalorder %s17, 1
    %p60 = por %p58, %p59
    %p61 = scmp.ne.s32.totalorder %s53, %s56
    %p62 = scmp.eq.s32.totalorder %s17, 0
    %p63 = por %p61, %p62
    %p64 = scmp.ne.s32.totalorder %s53, %s56
    %p65 = scmp.eq.s32.totalorder %s22, 1
    %p66 = por %p64, %p65
    %p67 = scmp.ne.s32.totalorder %s56, %s57
    %p68 = scmp.eq.s32.totalorder %s22, 0
    %p69 = por %p67, %p68
    %p70 = scmp.ne.s32.totalorder %s56, %s57
    %p71 = scmp.eq.s32.totalorder %s23, 1
    %p72 = por %p70, %p71
    %p74 = scmp.ne.s32.totalorder %s57, %s73
    %p75 = scmp.eq.s32.totalorder %s23, 0
    %p76 = por %p74, %p75
    %s78 = sadd.s32 %s77, 1
    %p81 = scmp.eq.s32.totalorder %s17, 1
    %p82 = scmp.ne.s32.totalorder %s77, %s79
    %p83 = scmp.eq.s32.totalorder %s17, 0
    %p84 = por %p82, %p83
    %p85 = scmp.ne.s32.totalorder %s77, %s79
    %p86 = scmp.eq.s32.totalorder %s22, 1
    %p87 = por %p85, %p86
    %p88 = scmp.ne.s32.totalorder %s79, %s80
    %p89 = scmp.eq.s32.totalorder %s22, 0
    %p90 = por %p88, %p89
    %p91 = scmp.ne.s32.totalorder %s79, %s80
    %p92 = scmp.eq.s32.totalorder %s23, 1
    %p93 = por %p91, %p92
    %p95 = scmp.ne.s32.totalorder %s80, %s94
    %p96 = scmp.eq.s32.totalorder %s23, 0
    %p97 = por %p95, %p96
    %s99 = sadd.s32 %s98, 1
    %p102 = scmp.eq.s32.totalorder %s17, 1
    %p103 = scmp.ne.s32.totalorder %s98, %s100
    %p104 = scmp.eq.s32.totalorder %s17, 0
    %p105 = por %p103, %p104
    %p106 = scmp.ne.s32.totalorder %s98, %s100
    %p107 = scmp.eq.s32.totalorder %s22, 1
    %p108 = por %p106, %p107
    %p109 = scmp.ne.s32.totalorder %s100, %s101
    %p110 = scmp.eq.s32.totalorder %s22, 0
    %p111 = por %p109, %p110
    %p112 = scmp.ne.s32.totalorder %s100, %s101
    %p113 = scmp.eq.s32.totalorder %s23, 1
    %p114 = por %p112, %p113
    %p116 = scmp.ne.s32.totalorder %s101, %s115
    %p117 = scmp.eq.s32.totalorder %s23, 0
    %p118 = por %p116, %p117
    %s120 = sadd.s32 %s119, 1
    %p123 = scmp.eq.s32.totalorder %s17, 1
    %p124 = scmp.ne.s32.totalorder %s119, %s121
    %p125 = scmp.eq.s32.totalorder %s17, 0
    %p126 = por %p124, %p125
    %p127 = scmp.ne.s32.totalorder %s119, %s121
    %p128 = scmp.eq.s32.totalorder %s22, 1
    %p129 = por %p127, %p128
    %p130 = scmp.ne.s32.totalorder %s121, %s122
    %p131 = scmp.eq.s32.totalorder %s22, 0
    %p132 = por %p130, %p131
    %p133 = scmp.ne.s32.totalorder %s121, %s122
    %p134 = scmp.eq.s32.totalorder %s23, 1
    %p135 = por %p133, %p134
    %p137 = scmp.ne.s32.totalorder %s122, %s136
    %p138 = scmp.eq.s32.totalorder %s23, 0
    %p139 = por %p137, %p138
    %s141 = sadd.s32 %s140, 1
    %p144 = scmp.eq.s32.totalorder %s17, 1
    %p145 = scmp.ne.s32.totalorder %s140, %s142
    %p146 = scmp.eq.s32.totalorder %s17, 0
    %p147 = por %p145, %p146
    %p148 = scmp.ne.s32.totalorder %s140, %s142
    %p149 = scmp.eq.s32.totalorder %s22, 1
    %p150 = por %p148, %p149
    %p151 = scmp.ne.s32.totalorder %s142, %s143
    %p152 = scmp.eq.s32.totalorder %s22, 0
    %p153 = por %p151, %p152
    %p154 = scmp.ne.s32.totalorder %s142, %s143
    %p155 = scmp.eq.s32.totalorder %s23, 1
    %p156 = por %p154, %p155
    %p158 = scmp.ne.s32.totalorder %s143, %s157
    %p159 = scmp.eq.s32.totalorder %s23, 0
    %p160 = por %p158, %p159
    %s162 = sadd.s32 %s161, 1
    %p165 = scmp.eq.s32.totalorder %s17, 1
    %p166 = scmp.ne.s32.totalorder %s161, %s163
    %p167 = scmp.eq.s32.totalorder %s17, 0
    %p168 = por %p166, %p167
    %p169 = scmp.ne.s32.totalorder %s161, %s163
    %p170 = scmp.eq.s32.totalorder %s22, 1
    %p171 = por %p169, %p170
    %p172 = scmp.ne.s32.totalorder %s163, %s164
    %p173 = scmp.eq.s32.totalorder %s22, 0
    %p174 = por %p172, %p173
    %p175 = scmp.ne.s32.totalorder %s163, %s164
    %p176 = scmp.eq.s32.totalorder %s23, 1
    %p177 = por %p175, %p176
    %p179 = scmp.ne.s32.totalorder %s164, %s178
    %p180 = scmp.eq.s32.totalorder %s23, 0
    %p181 = por %p179, %p180
    %s183 = sadd.s32 %s182, 1
    %p186 = scmp.eq.s32.totalorder %s17, 1
    %p187 = scmp.ne.s32.totalorder %s182, %s184
    %p188 = scmp.eq.s32.totalorder %s17, 0
    %p189 = por %p187, %p188
    %p190 = scmp.ne.s32.totalorder %s182, %s184
    %p191 = scmp.eq.s32.totalorder %s22, 1
    %p192 = por %p190, %p191
    %p193 = scmp.ne.s32.totalorder %s184, %s185
    %p194 = scmp.eq.s32.totalorder %s22, 0
    %p195 = por %p193, %p194
    %p196 = scmp.ne.s32.totalorder %s184, %s185
    %p197 = scmp.eq.s32.totalorder %s23, 1
    %p198 = por %p196, %p197
    %p200 = scmp.ne.s32.totalorder %s185, %s199
    %p201 = scmp.eq.s32.totalorder %s23, 0
    %p202 = por %p200, %p201
    %s204 = sadd.s32 %s203, 1
    %p207 = scmp.eq.s32.totalorder %s17, 1
    %p208 = scmp.ne.s32.totalorder %s203, %s205
    %p209 = scmp.eq.s32.totalorder %s17, 0
    %p210 = por %p208, %p209
    %p211 = scmp.ne.s32.totalorder %s203, %s205
    %p212 = scmp.eq.s32.totalorder %s22, 1
    %p213 = por %p211, %p212
    %p214 = scmp.ne.s32.totalorder %s205, %s206
    %p215 = scmp.eq.s32.totalorder %s22, 0
    %p216 = por %p214, %p215
    %p217 = scmp.ne.s32.totalorder %s205, %s206
    %p218 = scmp.eq.s32.totalorder %s23, 1
    %p219 = por %p217, %p218
    %p221 = scmp.ne.s32.totalorder %s206, %s220
    %p222 = scmp.eq.s32.totalorder %s23, 0
    %p223 = por %p221, %p222
    %s224 = ssub.s32 %s17, %s24
    %p225 = scmp.eq.s32.totalorder %s224, 0
    %s227 = sadd.s32 %s226, 1
    %s228 = scalar_select %p225, %s226, %s227
    %p231 = pneg %p225
    %p232 = scmp.eq.s32.totalorder %s17, 1
    %p233 = por %p231, %p232
    %p234 = scmp.ne.s32.totalorder %s226, %s229
    %p235 = scmp.eq.s32.totalorder %s17, 0
    %p236 = por %p234, %p235
    %p237 = scmp.ne.s32.totalorder %s226, %s229
    %p238 = scmp.eq.s32.totalorder %s22, 1
    %p239 = por %p237, %p238
    %p240 = scmp.ne.s32.totalorder %s229, %s230
    %p241 = scmp.eq.s32.totalorder %s22, 0
    %p242 = por %p240, %p241
    %p243 = scmp.ne.s32.totalorder %s229, %s230
    %p244 = scmp.eq.s32.totalorder %s23, 1
    %p245 = por %p243, %p244
    %p247 = scmp.ne.s32.totalorder %s230, %s246
    %p248 = scmp.eq.s32.totalorder %s23, 0
    %p249 = por %p247, %p248
    %p250 = scmp.le.s32.totalorder 1, %s17
    %p251 = scmp.lt.s32.totalorder %s17, 3
    %p252 = pnand %p250, %p251
    %p253 = pneg %p252
    // Predicated region
    $region9: #{critic_forward.1} parent=5 // pred_check
      _
    $region10: #{critic_forward.1} parent=5 // pred_check_branch
      %255 = sbr.rel (%p252) target = $region12
    $region11: #{critic_forward.1} parent=5 // pred_region
      %s256 = ssub.s32 %s17, 1
      // Predicated region
      $region13: #{critic_forward.1} parent=11 // pred_check
        %p257 = pneg %p90
      $region14: #{critic_forward.1} parent=11 // pred_check_branch
        %259 = sbr.rel (%p257) target = $region16
      $region15: #{critic_forward.1} parent=11 // pred_region
        _
      $region16: #{critic_forward.1} parent=11 // pred_fallthru
        _
      // Predicated region
      $region17: #{critic_forward.1} parent=11 // pred_check
        %p260 = pneg %p111
      $region18: #{critic_forward.1} parent=11 // pred_check_branch
        %262 = sbr.rel (%p260) target = $region20
      $region19: #{critic_forward.1} parent=11 // pred_region
        _
      $region20: #{critic_forward.1} parent=11 // pred_fallthru
        _
      // Predicated region
      $region21: #{critic_forward.1} parent=11 // pred_check
        %p263 = pneg %p132
      $region22: #{critic_forward.1} parent=11 // pred_check_branch
        %265 = sbr.rel (%p263) target = $region24
      $region23: #{critic_forward.1} parent=11 // pred_region
        _
      $region24: #{critic_forward.1} parent=11 // pred_fallthru
        _
      // Predicated region
      $region25: #{critic_forward.1} parent=11 // pred_check
        %p266 = pneg %p153
      $region26: #{critic_forward.1} parent=11 // pred_check_branch
        %268 = sbr.rel (%p266) target = $region28
      $region27: #{critic_forward.1} parent=11 // pred_region
        _
      $region28: #{critic_forward.1} parent=11 // pred_fallthru
        _
      // Predicated region
      $region29: #{critic_forward.1} parent=11 // pred_check
        %p269 = pneg %p174
      $region30: #{critic_forward.1} parent=11 // pred_check_branch
        %271 = sbr.rel (%p269) target = $region32
      $region31: #{critic_forward.1} parent=11 // pred_region
        _
      $region32: #{critic_forward.1} parent=11 // pred_fallthru
        _
      // Predicated region
      $region33: #{critic_forward.1} parent=11 // pred_check
        %p272 = pneg %p195
      $region34: #{critic_forward.1} parent=11 // pred_check_branch
        %274 = sbr.rel (%p272) target = $region36
      $region35: #{critic_forward.1} parent=11 // pred_region
        _
      $region36: #{critic_forward.1} parent=11 // pred_fallthru
        _
      // Predicated region
      $region37: #{critic_forward.1} parent=11 // pred_check
        %p275 = pneg %p216
      $region38: #{critic_forward.1} parent=11 // pred_check_branch
        %277 = sbr.rel (%p275) target = $region40
      $region39: #{critic_forward.1} parent=11 // pred_region
        _
      $region40: #{critic_forward.1} parent=11 // pred_fallthru
        _
    $region12: #{critic_forward.1} parent=5 // pred_fallthru
      _
    %p278 = scmp.lt.s32.totalorder %s17, 2
    // Predicated region
    $region41: #{critic_forward.1} parent=5 // pred_check
      %p279 = pneg %p278
    $region42: #{critic_forward.1} parent=5 // pred_check_branch
      %281 = sbr.rel (%p279) target = $region44
    $region43: #{critic_forward.1} parent=5 // pred_region
      // Predicated region
      $region45: #{critic_forward.1} parent=43 // pred_check
        %p282 = pneg %p37
      $region46: #{critic_forward.1} parent=43 // pred_check_branch
        %284 = sbr.rel (%p282) target = $region48
      $region47: #{critic_forward.1} parent=43 // pred_region
        %s285 = smul.u32 4, %s17
        %p286 = scmp.lt.s32.totalorder %s285, 7
        %s287 = scalar_select %p286, %s285, 7
        %s288 = smul.addr %s287, 8
        %s289 = scalar_lea.vmem %s0, %s288
        %s290 = smul.u32 4, %s17
      $region48: #{critic_forward.1} parent=43 // pred_fallthru
        _
      // Predicated region
      $region49: #{critic_forward.1} parent=43 // pred_check
        %p291 = pneg %p63
      $region50: #{critic_forward.1} parent=43 // pred_check_branch
        %293 = sbr.rel (%p291) target = $region52
      $region51: #{critic_forward.1} parent=43 // pred_region
        %s294 = smul.u32 4, %s17
        %p295 = scmp.lt.s32.totalorder %s294, 7
        %s296 = scalar_select %p295, %s294, 7
        %s297 = smul.addr %s296, 8
        %s298 = scalar_lea.vmem %s1, %s297
        %s299 = smul.u32 4, %s17
      $region52: #{critic_forward.1} parent=43 // pred_fallthru
        _
    $region44: #{critic_forward.1} parent=5 // pred_fallthru
      _
    %p300 = scmp.le.s32.totalorder 1, %s17
    %p301 = scmp.lt.s32.totalorder %s17, 3
    %p302 = pnand %p300, %p301
    %p303 = pneg %p302
    // Predicated region
    $region53: #{critic_forward.1} parent=5 // pred_check
      _
    $region54: #{critic_forward.1} parent=5 // pred_check_branch
      %305 = sbr.rel (%p302) target = $region56
    $region55: #{critic_forward.1} parent=5 // pred_region
      %s306 = ssub.s32 %s17, 1
      %s307 = smul.u32 4, %s22
      %p308 = scmp.lt.s32.totalorder %s307, 7
      %s309 = scalar_select %p308, %s307, 7
      %s310 = smul.addr %s309, 8
      %s311 = scalar_lea.vmem %s0, %s310
      %p312 = pneg %p43
      %p313 = pneg %p40
      %s314 = smul.u32 4, %s22
      %p315 = scmp.lt.s32.totalorder %s314, 7
      %s316 = scalar_select %p315, %s314, 7
      %s317 = smul.addr %s316, 8
      %s318 = scalar_lea.vmem %s1, %s317
      %p319 = pneg %p69
      %p320 = pneg %p66
      %p321 = pneg %p90
      %p322 = pneg %p87
      %p323 = pneg %p111
      %p324 = pneg %p108
      %p325 = pneg %p132
      %p326 = pneg %p129
      %p327 = pneg %p153
      %p328 = pneg %p150
      %p329 = pneg %p174
      %p330 = pneg %p171
      %p331 = pneg %p195
      %p332 = pneg %p192
      %p333 = pneg %p216
      %p334 = pneg %p213
      %p335 = pneg %p242
      %p336 = pneg %p239
      %s337 = smul.u32 4, %s22
      %p338 = scmp.lt.s32.totalorder %s337, 7
      %s339 = scalar_select %p338, %s337, 7
      %s340 = smul.addr %s339, 8
      %s341 = scalar_lea.vmem %s9, %s340
      %s342 = smul.u32 4, %s22
      %p343 = scmp.lt.s32.totalorder %s342, 7
      %s344 = scalar_select %p343, %s342, 7
      %s345 = smul.addr %s344, 8
      %s346 = scalar_lea.vmem %s0, %s345
      %s347 = smul.u32 4, %s22
      %s348 = smul.u32 4, %s22
      %p349 = scmp.lt.s32.totalorder %s348, 7
      %s350 = scalar_select %p349, %s348, 7
      %s351 = smul.addr %s350, 8
      %s352 = scalar_lea.vmem %s1, %s351
      %s353 = smul.u32 4, %s22
      %s354 = smul.u32 4, %s22
      %p355 = scmp.lt.s32.totalorder %s354, 7
      %s356 = scalar_select %p355, %s354, 7
      %s357 = smul.addr %s356, 8
      %s358 = scalar_lea.vmem %s9, %s357
      %s359 = smul.u32 4, %s22
      %v360 = vld [vmem:[%s346] sm:$0xff]
      %v361 = vld [vmem:[%s346 + $0x8] sm:$0xff]
      %v362 = vld [vmem:[%s346 + $0x10] sm:$0xff]
      %v363 = vld [vmem:[%s346 + $0x18] sm:$0xff]
      %v364 = vld [vmem:[%s2] sm:$0xff]
      %v365 = vld [vmem:[%s2 + $0x8] sm:$0xff]
      %v366 = vld [vmem:[%s2 + $0x10] sm:$0xff]
      %v367 = vld [vmem:[%s352] sm:$0xff]
      %v368 = vld [vmem:[%s352 + $0x8] sm:$0xff]
      %v369 = vld [vmem:[%s352 + $0x10] sm:$0xff]
      %v370 = vld [vmem:[%s352 + $0x18] sm:$0xff]
      %v371 = vld [vmem:[%s3] sm:$0xff]
      %vm372 = vcmask 64512
      %v374 = vsel %vm372, %v367, 0
      %v377 = vsel %vm372, %v368, 0
      %v380 = vsel %vm372, %v369, 0
      %v383 = vsel %vm372, %v370, 0
      %385 = vmatprep.subr.mxu0 0.0
      %386 = vmatpush1.msra.mxu0 %v371
      %387 = vmatprep.subr.mxu0 0.0
      %388 = vmatpush1.msra.mxu0 0.0
      %389 = vmatprep.subr.mxu0 0.0
      %390 = vmatpush1.msra.mxu0 0.0
      %391 = vmatprep.subr.mxu0 0.0
      %392 = vmatpush1.msra.mxu0 0.0
      %393 = vmatprep.subr.mxu0 0.0
      %394 = vmatpush1.msra.mxu0 0.0
      %395 = vmatprep.subr.mxu0 0.0
      %396 = vmatpush1.msra.mxu0 0.0
      %397 = vmatprep.subr.mxu0 0.0
      %398 = vmatpush1.msra.mxu0 0.0
      %399 = vmatprep.subr.mxu0 0.0
      %400 = vmatpush1.msra.mxu0 0.0
      %401 = vmatprep.subr.mxu0 0.0
      %402 = vmatpush1.msra.mxu0 0.0
      %403 = vmatprep.subr.mxu0 0.0
      %404 = vmatpush1.msra.mxu0 0.0
      %405 = vmatprep.subr.mxu0 0.0
      %406 = vmatpush1.msra.mxu0 0.0
      %407 = vmatprep.subr.mxu0 0.0
      %408 = vmatpush1.msra.mxu0 0.0
      %409 = vmatprep.subr.mxu0 0.0
      %410 = vmatpush1.msra.mxu0 0.0
      %411 = vmatprep.subr.mxu0 0.0
      %412 = vmatpush1.msra.mxu0 0.0
      %413 = vmatprep.subr.mxu0 0.0
      %414 = vmatpush1.msra.mxu0 0.0
      %415 = vmatprep.subr.mxu0 0.0
      %416 = vmatpush1.msra.mxu0 0.0
      %417 = vmatprep.subr.mxu0 0.0
      %418 = vmatpush1.msra.mxu0 0.0
      %419 = vmatprep.subr.mxu0 0.0
      %420 = vmatpush1.msra.mxu0 0.0
      %421 = vmatprep.subr.mxu0 0.0
      %422 = vmatpush1.msra.mxu0 0.0
      %423 = vmatprep.subr.mxu0 0.0
      %424 = vmatpush1.msra.mxu0 0.0
      %425 = vmatprep.subr.mxu0 0.0
      %426 = vmatpush1.msra.mxu0 0.0
      %427 = vmatprep.subr.mxu0 0.0
      %428 = vmatpush1.msra.mxu0 0.0
      %429 = vmatprep.subr.mxu0 0.0
      %430 = vmatpush1.msra.mxu0 0.0
      %431 = vmatprep.subr.mxu0 0.0
      %432 = vmatpush1.msra.mxu0 0.0
      %433 = vmatprep.subr.mxu0 0.0
      %434 = vmatpush1.msra.mxu0 0.0
      %435 = vmatprep.subr.mxu0 0.0
      %436 = vmatpush1.msra.mxu0 0.0
      %437 = vmatprep.subr.mxu0 0.0
      %438 = vmatpush1.msra.mxu0 0.0
      %439 = vmatprep.subr.mxu0 0.0
      %440 = vmatpush1.msra.mxu0 0.0
      %441 = vmatprep.subr.mxu0 0.0
      %442 = vmatpush1.msra.mxu0 0.0
      %443 = vmatprep.subr.mxu0 0.0
      %444 = vmatpush1.msra.mxu0 0.0
      %445 = vmatprep.subr.mxu0 0.0
      %446 = vmatpush1.msra.mxu0 0.0
      %447 = vmatprep.subr.mxu0 0.0
      %448 = vmatpush1.msra.mxu0 0.0
      %449 = vmatprep.mubr.f32.mxu0 0.0
      %450 = vmatmul.mubr.f32.gmra.mrb[0].mxu0 %v374
      %v451 = vpop.f32.mrb[0].mxu0
      %v452 = vadd.f32 0.0, %v451
      %v453 = vpop.f32.mrb[0].mxu0
      %454 = vmatprep.mubr.f32.mxu0 0.0
      %455 = vmatmul.mubr.f32.gmra.mrb[0].mxu0 %v377
      %v456 = vpop.f32.mrb[0].mxu0
      %v457 = vadd.f32 0.0, %v456
      %v458 = vpop.f32.mrb[0].mxu0
      %459 = vmatprep.mubr.f32.mxu0 0.0
      %460 = vmatmul.mubr.f32.gmra.mrb[0].mxu0 %v380
      %v461 = vpop.f32.mrb[0].mxu0
      %v462 = vadd.f32 0.0, %v461
      %v463 = vpop.f32.mrb[0].mxu0
      %464 = vmatprep.mubr.f32.mxu0 0.0
      %465 = vmatmul.mubr.f32.gmra.mrb[0].mxu0 %v383
      %v466 = vpop.f32.mrb[0].mxu0
      %v467 = vadd.f32 0.0, %v466
      %v468 = vpop.f32.mrb[0].mxu0
      %469 = vdwg.mxu0
      %vm470 = vcmask 195584
      %v472 = vsel %vm470, %v360, 0
      %v475 = vsel %vm470, %v361, 0
      %v478 = vsel %vm470, %v362, 0
      %v481 = vsel %vm470, %v363, 0
      %483 = vmatprep.subr.mxu0 0.0
      %484 = vmatpush1.msra.mxu0 %v364
      %485 = vmatprep.subr.mxu0 0.0
      %486 = vmatpush1.msra.mxu0 %v365
      %487 = vmatprep.subr.mxu0 0.0
      %488 = vmatpush1.msra.mxu0 %v366
      %489 = vmatprep.subr.mxu0 0.0
      %490 = vmatpush1.msra.mxu0 0.0
      %491 = vmatprep.subr.mxu0 0.0
      %492 = vmatpush1.msra.mxu0 0.0
      %493 = vmatprep.subr.mxu0 0.0
      %494 = vmatpush1.msra.mxu0 0.0
      %495 = vmatprep.subr.mxu0 0.0
      %496 = vmatpush1.msra.mxu0 0.0
      %497 = vmatprep.subr.mxu0 0.0
      %498 = vmatpush1.msra.mxu0 0.0
      %499 = vmatprep.subr.mxu0 0.0
      %500 = vmatpush1.msra.mxu0 0.0
      %501 = vmatprep.subr.mxu0 0.0
      %502 = vmatpush1.msra.mxu0 0.0
      %503 = vmatprep.subr.mxu0 0.0
      %504 = vmatpush1.msra.mxu0 0.0
      %505 = vmatprep.subr.mxu0 0.0
      %506 = vmatpush1.msra.mxu0 0.0
      %507 = vmatprep.subr.mxu0 0.0
      %508 = vmatpush1.msra.mxu0 0.0
      %509 = vmatprep.subr.mxu0 0.0
      %510 = vmatpush1.msra.mxu0 0.0
      %511 = vmatprep.subr.mxu0 0.0
      %512 = vmatpush1.msra.mxu0 0.0
      %513 = vmatprep.subr.mxu0 0.0
      %514 = vmatpush1.msra.mxu0 0.0
      %515 = vmatprep.subr.mxu0 0.0
      %516 = vmatpush1.msra.mxu0 0.0
      %517 = vmatprep.subr.mxu0 0.0
      %518 = vmatpush1.msra.mxu0 0.0
      %519 = vmatprep.subr.mxu0 0.0
      %520 = vmatpush1.msra.mxu0 0.0
      %521 = vmatprep.subr.mxu0 0.0
      %522 = vmatpush1.msra.mxu0 0.0
      %523 = vmatprep.subr.mxu0 0.0
      %524 = vmatpush1.msra.mxu0 0.0
      %525 = vmatprep.subr.mxu0 0.0
      %526 = vmatpush1.msra.mxu0 0.0
      %527 = vmatprep.subr.mxu0 0.0
      %528 = vmatpush1.msra.mxu0 0.0
      %529 = vmatprep.subr.mxu0 0.0
      %530 = vmatpush1.msra.mxu0 0.0
      %531 = vmatprep.subr.mxu0 0.0
      %532 = vmatpush1.msra.mxu0 0.0
      %533 = vmatprep.subr.mxu0 0.0
      %534 = vmatpush1.msra.mxu0 0.0
      %535 = vmatprep.subr.mxu0 0.0
      %536 = vmatpush1.msra.mxu0 0.0
      %537 = vmatprep.subr.mxu0 0.0
      %538 = vmatpush1.msra.mxu0 0.0
      %539 = vmatprep.subr.mxu0 0.0
      %540 = vmatpush1.msra.mxu0 0.0
      %541 = vmatprep.subr.mxu0 0.0
      %542 = vmatpush1.msra.mxu0 0.0
      %543 = vmatprep.subr.mxu0 0.0
      %544 = vmatpush1.msra.mxu0 0.0
      %545 = vmatprep.subr.mxu0 0.0
      %546 = vmatpush1.msra.mxu0 0.0
      %547 = vmatprep.mubr.f32.mxu0 0.0
      %548 = vmatmul.mubr.f32.gmra.mrb[0].mxu0 %v472
      %v549 = vpop.f32.mrb[0].mxu0
      %v550 = vadd.f32 %v452, %v549
      %v551 = vpop.f32.mrb[0].mxu0
      %552 = vmatprep.mubr.f32.mxu0 0.0
      %553 = vmatmul.mubr.f32.gmra.mrb[0].mxu0 %v475
      %v554 = vpop.f32.mrb[0].mxu0
      %v555 = vadd.f32 %v457, %v554
      %v556 = vpop.f32.mrb[0].mxu0
      %557 = vmatprep.mubr.f32.mxu0 0.0
      %558 = vmatmul.mubr.f32.gmra.mrb[0].mxu0 %v478
      %v559 = vpop.f32.mrb[0].mxu0
      %v560 = vadd.f32 %v462, %v559
      %v561 = vpop.f32.mrb[0].mxu0
      %562 = vmatprep.mubr.f32.mxu0 0.0
      %563 = vmatmul.mubr.f32.gmra.mrb[0].mxu0 %v481
      %v564 = vpop.f32.mrb[0].mxu0
      %v565 = vadd.f32 %v467, %v564
      %v566 = vpop.f32.mrb[0].mxu0
      %567 = vdwg.mxu0
      %v568 = vld [vmem:[%s4] sm:$0x1]
      %v570 = vlaneseq
      %v571 = vshrl.u32 %v570, 7
      %v572 = vsub.s32 0, %v571
      %v573 = vrot.slane %v568, %v572
      %v575 = vadd.f32 %v550, %v573
      %v576 = vadd.f32 %v555, %v573
      %v577 = vadd.f32 %v560, %v573
      %v578 = vadd.f32 %v565, %v573
      %v579 = vmax.f32 %v575, 0.0
      %v580 = vmax.f32 %v576, 0.0
      %v581 = vmax.f32 %v577, 0.0
      %v582 = vmax.f32 %v578, 0.0
      %v583 = vld [vmem:[%s5] sm:$0xff]
      %v584 = vld [vmem:[%s5 + $0x8] sm:$0xff]
      %v585 = vld [vmem:[%s5 + $0x10] sm:$0xff]
      %v586 = vld [vmem:[%s5 + $0x18] sm:$0xff]
      %v587 = vld [vmem:[%s5 + $0x20] sm:$0xff]
      %v588 = vld [vmem:[%s5 + $0x28] sm:$0xff]
      %v589 = vld [vmem:[%s5 + $0x30] sm:$0xff]
      %v590 = vld [vmem:[%s5 + $0x38] sm:$0xff]
      %v591 = vld [vmem:[%s6] sm:$0x1]
      %v593 = vlaneseq
      %v594 = vshrl.u32 %v593, 7
      %v595 = vsub.s32 0, %v594
      %v596 = vrot.slane %v591, %v595
      %vm598 = vcmask 523264
      %v600 = vsel %vm598, %v579, 0
      %v603 = vsel %vm598, %v580, 0
      %v606 = vsel %vm598, %v581, 0
      %v609 = vsel %vm598, %v582, 0
      %611 = vmatprep.subr.mxu0 0.0
      %612 = vmatpush1.msra.mxu0 %v583
      %613 = vmatprep.subr.mxu0 0.0
      %614 = vmatpush1.msra.mxu0 %v584
      %615 = vmatprep.subr.mxu0 0.0
      %616 = vmatpush1.msra.mxu0 %v585
      %617 = vmatprep.subr.mxu0 0.0
      %618 = vmatpush1.msra.mxu0 %v586
      %619 = vmatprep.subr.mxu0 0.0
      %620 = vmatpush1.msra.mxu0 %v587
      %621 = vmatprep.subr.mxu0 0.0
      %622 = vmatpush1.msra.mxu0 %v588
      %623 = vmatprep.subr.mxu0 0.0
      %624 = vmatpush1.msra.mxu0 %v589
      %625 = vmatprep.subr.mxu0 0.0
      %626 = vmatpush1.msra.mxu0 %v590
      %627 = vmatprep.subr.mxu0 0.0
      %628 = vmatpush1.msra.mxu0 0.0
      %629 = vmatprep.subr.mxu0 0.0
      %630 = vmatpush1.msra.mxu0 0.0
      %631 = vmatprep.subr.mxu0 0.0
      %632 = vmatpush1.msra.mxu0 0.0
      %633 = vmatprep.subr.mxu0 0.0
      %634 = vmatpush1.msra.mxu0 0.0
      %635 = vmatprep.subr.mxu0 0.0
      %636 = vmatpush1.msra.mxu0 0.0
      %637 = vmatprep.subr.mxu0 0.0
      %638 = vmatpush1.msra.mxu0 0.0
      %639 = vmatprep.subr.mxu0 0.0
      %640 = vmatpush1.msra.mxu0 0.0
      %641 = vmatprep.subr.mxu0 0.0
      %642 = vmatpush1.msra.mxu0 0.0
      %643 = vmatprep.subr.mxu0 0.0
      %644 = vmatpush1.msra.mxu0 0.0
      %645 = vmatprep.subr.mxu0 0.0
      %646 = vmatpush1.msra.mxu0 0.0
      %647 = vmatprep.subr.mxu0 0.0
      %648 = vmatpush1.msra.mxu0 0.0
      %649 = vmatprep.subr.mxu0 0.0
      %650 = vmatpush1.msra.mxu0 0.0
      %651 = vmatprep.subr.mxu0 0.0
      %652 = vmatpush1.msra.mxu0 0.0
      %653 = vmatprep.subr.mxu0 0.0
      %654 = vmatpush1.msra.mxu0 0.0
      %655 = vmatprep.subr.mxu0 0.0
      %656 = vmatpush1.msra.mxu0 0.0
      %657 = vmatprep.subr.mxu0 0.0
      %658 = vmatpush1.msra.mxu0 0.0
      %659 = vmatprep.subr.mxu0 0.0
      %660 = vmatpush1.msra.mxu0 0.0
      %661 = vmatprep.subr.mxu0 0.0
      %662 = vmatpush1.msra.mxu0 0.0
      %663 = vmatprep.subr.mxu0 0.0
      %664 = vmatpush1.msra.mxu0 0.0
      %665 = vmatprep.subr.mxu0 0.0
      %666 = vmatpush1.msra.mxu0 0.0
      %667 = vmatprep.subr.mxu0 0.0
      %668 = vmatpush1.msra.mxu0 0.0
      %669 = vmatprep.subr.mxu0 0.0
      %670 = vmatpush1.msra.mxu0 0.0
      %671 = vmatprep.subr.mxu0 0.0
      %672 = vmatpush1.msra.mxu0 0.0
      %673 = vmatprep.subr.mxu0 0.0
      %674 = vmatpush1.msra.mxu0 0.0
      %675 = vmatprep.mubr.f32.mxu0 0.0
      %676 = vmatmul.mubr.f32.gmra.mrb[0].mxu0 %v600
      %v677 = vpop.f32.mrb[0].mxu0
      %v678 = vadd.f32 %v596, %v677
      %v679 = vpop.f32.mrb[0].mxu0
      %680 = vmatprep.mubr.f32.mxu0 0.0
      %681 = vmatmul.mubr.f32.gmra.mrb[0].mxu0 %v603
      %v682 = vpop.f32.mrb[0].mxu0
      %v683 = vadd.f32 %v596, %v682
      %v684 = vpop.f32.mrb[0].mxu0
      %685 = vmatprep.mubr.f32.mxu0 0.0
      %686 = vmatmul.mubr.f32.gmra.mrb[0].mxu0 %v606
      %v687 = vpop.f32.mrb[0].mxu0
      %v688 = vadd.f32 %v596, %v687
      %v689 = vpop.f32.mrb[0].mxu0
      %690 = vmatprep.mubr.f32.mxu0 0.0
      %691 = vmatmul.mubr.f32.gmra.mrb[0].mxu0 %v609
      %v692 = vpop.f32.mrb[0].mxu0
      %v693 = vadd.f32 %v596, %v692
      %v694 = vpop.f32.mrb[0].mxu0
      %695 = vdwg.mxu0
      %v696 = vmax.f32 %v678, 0.0
      %v697 = vmax.f32 %v683, 0.0
      %v698 = vmax.f32 %v688, 0.0
      %v699 = vmax.f32 %v693, 0.0
      %v700 = vld [vmem:[%s7] sm:$0xff]
      %v701 = vld [vmem:[%s7 + $0x8] sm:$0xff]
      %v702 = vld [vmem:[%s7 + $0x10] sm:$0xff]
      %v703 = vld [vmem:[%s7 + $0x18] sm:$0xff]
      %v704 = vld [vmem:[#allocation2] sm:$0x1]
      %v706 = vlaneseq
      %v707 = vshrl.u32 %v706, 7
      %v708 = vsub.s32 0, %v707
      %v709 = vrot.slane %v704, %v708
      %vm711 = vcmask 261120
      %v713 = vsel %vm711, %v696, 0
      %v716 = vsel %vm711, %v697, 0
      %v719 = vsel %vm711, %v698, 0
      %v722 = vsel %vm711, %v699, 0
      %724 = vmatprep.subr.mxu0 0.0
      %725 = vmatpush1.msra.mxu0 %v700
      %726 = vmatprep.subr.mxu0 0.0
      %727 = vmatpush1.msra.mxu0 %v701
      %728 = vmatprep.subr.mxu0 0.0
      %729 = vmatpush1.msra.mxu0 %v702
      %730 = vmatprep.subr.mxu0 0.0
      %731 = vmatpush1.msra.mxu0 %v703
      %732 = vmatprep.subr.mxu0 0.0
      %733 = vmatpush1.msra.mxu0 0.0
      %734 = vmatprep.subr.mxu0 0.0
      %735 = vmatpush1.msra.mxu0 0.0
      %736 = vmatprep.subr.mxu0 0.0
      %737 = vmatpush1.msra.mxu0 0.0
      %738 = vmatprep.subr.mxu0 0.0
      %739 = vmatpush1.msra.mxu0 0.0
      %740 = vmatprep.subr.mxu0 0.0
      %741 = vmatpush1.msra.mxu0 0.0
      %742 = vmatprep.subr.mxu0 0.0
      %743 = vmatpush1.msra.mxu0 0.0
      %744 = vmatprep.subr.mxu0 0.0
      %745 = vmatpush1.msra.mxu0 0.0
      %746 = vmatprep.subr.mxu0 0.0
      %747 = vmatpush1.msra.mxu0 0.0
      %748 = vmatprep.subr.mxu0 0.0
      %749 = vmatpush1.msra.mxu0 0.0
      %750 = vmatprep.subr.mxu0 0.0
      %751 = vmatpush1.msra.mxu0 0.0
      %752 = vmatprep.subr.mxu0 0.0
      %753 = vmatpush1.msra.mxu0 0.0
      %754 = vmatprep.subr.mxu0 0.0
      %755 = vmatpush1.msra.mxu0 0.0
      %756 = vmatprep.subr.mxu0 0.0
      %757 = vmatpush1.msra.mxu0 0.0
      %758 = vmatprep.subr.mxu0 0.0
      %759 = vmatpush1.msra.mxu0 0.0
      %760 = vmatprep.subr.mxu0 0.0
      %761 = vmatpush1.msra.mxu0 0.0
      %762 = vmatprep.subr.mxu0 0.0
      %763 = vmatpush1.msra.mxu0 0.0
      %764 = vmatprep.subr.mxu0 0.0
      %765 = vmatpush1.msra.mxu0 0.0
      %766 = vmatprep.subr.mxu0 0.0
      %767 = vmatpush1.msra.mxu0 0.0
      %768 = vmatprep.subr.mxu0 0.0
      %769 = vmatpush1.msra.mxu0 0.0
      %770 = vmatprep.subr.mxu0 0.0
      %771 = vmatpush1.msra.mxu0 0.0
      %772 = vmatprep.subr.mxu0 0.0
      %773 = vmatpush1.msra.mxu0 0.0
      %774 = vmatprep.subr.mxu0 0.0
      %775 = vmatpush1.msra.mxu0 0.0
      %776 = vmatprep.subr.mxu0 0.0
      %777 = vmatpush1.msra.mxu0 0.0
      %778 = vmatprep.subr.mxu0 0.0
      %779 = vmatpush1.msra.mxu0 0.0
      %780 = vmatprep.subr.mxu0 0.0
      %781 = vmatpush1.msra.mxu0 0.0
      %782 = vmatprep.subr.mxu0 0.0
      %783 = vmatpush1.msra.mxu0 0.0
      %784 = vmatprep.subr.mxu0 0.0
      %785 = vmatpush1.msra.mxu0 0.0
      %786 = vmatprep.subr.mxu0 0.0
      %787 = vmatpush1.msra.mxu0 0.0
      %788 = vmatprep.mubr.f32.mxu0 0.0
      %789 = vmatmul.mubr.f32.gmra.mrb[0].mxu0 %v713
      %v790 = vpop.f32.mrb[0].mxu0
      %v791 = vadd.f32 %v709, %v790
      %v792 = vpop.f32.mrb[0].mxu0
      %793 = vmatprep.mubr.f32.mxu0 0.0
      %794 = vmatmul.mubr.f32.gmra.mrb[0].mxu0 %v716
      %v795 = vpop.f32.mrb[0].mxu0
      %v796 = vadd.f32 %v709, %v795
      %v797 = vpop.f32.mrb[0].mxu0
      %798 = vmatprep.mubr.f32.mxu0 0.0
      %799 = vmatmul.mubr.f32.gmra.mrb[0].mxu0 %v719
      %v800 = vpop.f32.mrb[0].mxu0
      %v801 = vadd.f32 %v709, %v800
      %v802 = vpop.f32.mrb[0].mxu0
      %803 = vmatprep.mubr.f32.mxu0 0.0
      %804 = vmatmul.mubr.f32.gmra.mrb[0].mxu0 %v722
      %v805 = vpop.f32.mrb[0].mxu0
      %v806 = vadd.f32 %v709, %v805
      %v807 = vpop.f32.mrb[0].mxu0
      %808 = vdwg.mxu0
      %vm809 = vcmask 7168
      %810 = vst.msk [vmem:[%s358] sm:$0xff] %vm809, %v791
      %811 = vst.msk [vmem:[%s358 + $0x8] sm:$0xff] %vm809, %v796
      %812 = vst.msk [vmem:[%s358 + $0x10] sm:$0xff] %vm809, %v801
      %813 = vst.msk [vmem:[%s358 + $0x18] sm:$0xff] %vm809, %v806
      %s814 = smul.u32 4, %s22
      %p815 = scmp.lt.s32.totalorder %s814, 7
      %s816 = scalar_select %p815, %s814, 7
      %s817 = smul.addr %s816, 8
      %s818 = scalar_lea.vmem %s9, %s817
      // Predicated region
      $region57: #{critic_forward.1} parent=55 // pred_check
        %p819 = pneg %p239
      $region58: #{critic_forward.1} parent=55 // pred_check_branch
        %821 = sbr.rel (%p819) target = $region60
      $region59: #{critic_forward.1} parent=55 // pred_region
        %s822 = smul.u32 4, %s22
      $region60: #{critic_forward.1} parent=55 // pred_fallthru
        _
    $region56: #{critic_forward.1} parent=5 // pred_fallthru
      _
    %p823 = scmp.le.s32.totalorder 2, %s17
    // Predicated region
    $region61: #{critic_forward.1} parent=5 // pred_check
      %p824 = pneg %p823
    $region62: #{critic_forward.1} parent=5 // pred_check_branch
      %826 = sbr.rel (%p824) target = $region64
    $region63: #{critic_forward.1} parent=5 // pred_region
      %s827 = ssub.s32 %s17, 2
      // Predicated region
      $region65: #{critic_forward.1} parent=63 // pred_check
        %p828 = pneg %p245
      $region66: #{critic_forward.1} parent=63 // pred_check_branch
        %830 = sbr.rel (%p828) target = $region68
      $region67: #{critic_forward.1} parent=63 // pred_region
        %s831 = smul.u32 4, %s23
        %p832 = scmp.lt.s32.totalorder %s831, 7
        %s833 = scalar_select %p832, %s831, 7
        %s834 = smul.addr %s833, 8
        %s835 = scalar_lea.vmem %s9, %s834
      $region68: #{critic_forward.1} parent=63 // pred_fallthru
        _
    $region64: #{critic_forward.1} parent=5 // pred_fallthru
      _
  $region6: #{critic_forward.1} parent=0 // loop_footer
    %s21 = sadd.s32 1, %s17
  $region7: #{critic_forward.1} parent=0 // loop_footer_branch
    %16 = sbr.rel target = $region3
  $region8: #{critic_forward.1} parent=0 // loop_exit
    _

</llo_original>
